<compile_context>
chip_gen: v7x
topology: tpu7x:2x2x1
jax: 0.10.0
libtpu: 0.0.40
codegen_flags: <defaults>
</compile_context>

<pallas_src>
import functools

import jax
import jax.numpy as jnp
from jax.experimental import pallas as pl
from jax.experimental.pallas import tpu as pltpu


def _small_basic_block_kernel(H, W, Cin, Cmid, Cout, ipb, use_bf16,
                              x_ref, w_ref, b_ref, o_ref):
    HW = H * W
    N = ipb * HW
    cdt = jnp.bfloat16 if use_bf16 else jnp.float32

    # -- gather the image block into one lane-dense (Cin, ipb*HW) slab --------
    # (each (Cin, HW) piece is a multiple of 128 lanes -> aligned concat).
    if ipb == 1:
        x = x_ref[0]
    else:
        x = jnp.concatenate([x_ref[i] for i in range(ipb)], axis=-1)
    x = x.astype(cdt)

    # -- unpack the packed parameter slabs (single DMA each) ------------------
    # Row offsets are multiples of Cmid (sublane-aligned at Cmid=8 here).
    w1 = w_ref[0:Cmid, 0:Cin].astype(cdt)                       # (Cmid, Cin)
    w2s = w_ref[Cmid:4 * Cmid, 0:Cmid].astype(cdt)              # (3*Cmid, Cmid)
    w3s = w_ref[4 * Cmid:7 * Cmid, 0:Cmid].astype(cdt)          # (3*Cmid, Cmid)
    w4 = w_ref[7 * Cmid:7 * Cmid + Cout, 0:Cmid].astype(cdt)    # (Cout, Cmid)
    b1 = b_ref[0:Cmid]                                          # (Cmid, 1)
    b2 = b_ref[Cmid:2 * Cmid]
    b3 = b_ref[2 * Cmid:3 * Cmid]
    b4 = b_ref[3 * Cmid:3 * Cmid + Cout]                        # (Cout, 1)

    # -- per-image boundary masks ---------------------------------------------
    # The batch shares the lane axis, so masks must come from the per-image
    # position q = pos % (H*W), not the flat lane index, or the cyclic rolls
    # would leak tap contributions between images.
    pos = jax.lax.broadcasted_iota(jnp.int32, (Cmid, N), 1)
    q = jnp.bitwise_and(pos, HW - 1) if (HW & (HW - 1)) == 0 else pos % HW
    col = jnp.bitwise_and(q, W - 1) if (W & (W - 1)) == 0 else q % W
    not_first_row = q >= W
    not_last_row = q < (H - 1) * W
    not_first_col = col != 0
    not_last_col = col != (W - 1)

    # ---- conv1: 1x1 conv + ReLU ---------------------------------------------
    h1 = jnp.dot(w1, x, preferred_element_type=jnp.float32)
    h1 = jnp.maximum(h1 + b1, 0.0)                               # (Cmid, N) f32

    # ---- conv2: (3,1) conv along H, pad=(1,0) + ReLU -------------------------
    # Single stacked matmul over the three taps; the row slices land on
    # Cmid-row (sublane-group) boundaries so they are free.  Each tap result
    # is rolled by +-W lanes and the wrapped boundary row is zeroed.
    y = jnp.dot(w2s, h1.astype(cdt), preferred_element_type=jnp.float32)
    y0, y1, y2 = y[0:Cmid], y[Cmid:2 * Cmid], y[2 * Cmid:3 * Cmid]
    h2 = (jnp.where(not_first_row, pltpu.roll(y0, shift=W, axis=1), 0.0)
          + y1
          + jnp.where(not_last_row, pltpu.roll(y2, shift=N - W, axis=1), 0.0)
          + b2)
    h2 = jnp.maximum(h2, 0.0)                                    # (Cmid, N)

    # ---- conv3: (1,3) conv along W, pad=(0,1) + ReLU -------------------------
    z = jnp.dot(w3s, h2.astype(cdt), preferred_element_type=jnp.float32)
    z0, z1, z2 = z[0:Cmid], z[Cmid:2 * Cmid], z[2 * Cmid:3 * Cmid]
    h3 = (jnp.where(not_first_col, pltpu.roll(z0, shift=1, axis=1), 0.0)
          + z1
          + jnp.where(not_last_col, pltpu.roll(z2, shift=N - 1, axis=1), 0.0)
          + b3)
    h3 = jnp.maximum(h3, 0.0)                                    # (Cmid, N)

    # ---- conv4: 1x1 conv (no ReLU) -------------------------------------------
    out = jnp.dot(w4, h3.astype(cdt), preferred_element_type=jnp.float32) + b4

    # Scatter back per image: every (Cout, HW) slice starts at a multiple of
    # 128 lanes, so each store is a full-width unmasked vst.
    for i in range(ipb):
        o_ref[i] = out[:, i * HW:(i + 1) * HW].astype(o_ref.dtype)


def small_basic_block_pallas(x_nchw, params, *, images_per_block=None,
                             use_bf16_matmul=False):
    """x_nchw: (B, C_in, H, W) float32.  Returns (B, C_out, H, W) float32.

    images_per_block: images merged onto the lane axis per grid step.
      Default = whole batch (one fat step; best for single-TC v5e/v6e).
      Use B // 2 on v7x to keep 2 'parallel' grid steps for its 2 TensorCores.
    use_bf16_matmul: feed bf16 operands to the MXU (f32 accumulate, f32
      elementwise) -- the native fast path on v6e/v7x.
    """
    w1, b1, w2, b2, w3, b3, w4, b4 = params
    B, Cin, H, W = x_nchw.shape
    Cmid = w1.shape[1]
    Cout = w4.shape[1]
    HW = H * W

    if images_per_block is None:
        images_per_block = B
    assert B % images_per_block == 0
    n_blocks = B // images_per_block

    # TODO(synk): for real LPRNet feature maps where H*W is not a multiple of
    # 128, zero-pad the flattened lane axis up to a multiple of 128 in the
    # wrapper (and trim afterwards) so stores stay unmasked.
    assert HW % 128 == 0, "flattened spatial axis must be lane-aligned"

    # ---- pack all parameters into one weight slab + one bias slab -----------
    # (9 tiny DMAs -> 2; the slabs are a couple of KB.)
    Ccol = max(Cin, Cmid)

    def _padc(m):
        return jnp.pad(m, ((0, 0), (0, Ccol - m.shape[1])))

    w1t = _padc(jnp.transpose(w1))                                   # (Cmid, Ccol)
    w2s = _padc(jnp.transpose(w2, (0, 2, 1)).reshape(3 * Cmid, Cmid))  # stacked H taps
    w3s = _padc(jnp.transpose(w3, (0, 2, 1)).reshape(3 * Cmid, Cmid))  # stacked W taps
    w4t = _padc(jnp.transpose(w4))                                   # (Cout, Ccol)
    w_slab = jnp.concatenate([w1t, w2s, w3s, w4t], axis=0)           # (7*Cmid+Cout, Ccol)
    w_slab = w_slab.astype(jnp.float32)

    b_slab = jnp.concatenate(
        [b1.reshape(Cmid, 1), b2.reshape(Cmid, 1),
         b3.reshape(Cmid, 1), b4.reshape(Cout, 1)], axis=0).astype(jnp.float32)

    # NCHW -> (B, C, H*W): free reshape, no transpose round-trip.
    x_flat = x_nchw.reshape(B, Cin, HW)

    kernel = functools.partial(_small_basic_block_kernel, H, W, Cin, Cmid,
                               Cout, images_per_block, use_bf16_matmul)

    # NOTE: VMEM is not a constraint at these sizes (tens of KB per step), so
    # no H-tiling; the only reason to increase n_blocks is TC parallelism.
    out_flat = pl.pallas_call(
        kernel,
        out_shape=jax.ShapeDtypeStruct((B, Cout, HW), jnp.float32),
        grid_spec=pltpu.PrefetchScalarGridSpec(
            num_scalar_prefetch=0,
            grid=(n_blocks,),
            in_specs=[
                pl.BlockSpec((images_per_block, Cin, HW), lambda g: (g, 0, 0)),
                pl.BlockSpec(w_slab.shape, lambda g: (0, 0)),
                pl.BlockSpec(b_slab.shape, lambda g: (0, 0)),
            ],
            out_specs=pl.BlockSpec((images_per_block, Cout, HW),
                                   lambda g: (g, 0, 0)),
        ),
        compiler_params=pltpu.CompilerParams(
            dimension_semantics=("parallel",)),
    )(x_flat, w_slab, b_slab)

    return out_flat.reshape(B, Cout, H, W)


def init_params(key, ch_in, ch_out):
    """Deterministic synthetic parameters (channels-last convention)."""
    cm = ch_out // 4
    ks = jax.random.split(key, 8)
    s = 0.1
    w1 = s * jax.random.normal(ks[0], (ch_in, cm), jnp.float32)
    b1 = s * jax.random.normal(ks[1], (1, cm), jnp.float32)
    w2 = s * jax.random.normal(ks[2], (3, cm, cm), jnp.float32)   # taps along H
    b2 = s * jax.random.normal(ks[3], (1, cm), jnp.float32)
    w3 = s * jax.random.normal(ks[4], (3, cm, cm), jnp.float32)   # taps along W
    b3 = s * jax.random.normal(ks[5], (1, cm), jnp.float32)
    w4 = s * jax.random.normal(ks[6], (cm, ch_out), jnp.float32)
    b4 = s * jax.random.normal(ks[7], (1, ch_out), jnp.float32)
    return (w1, b1, w2, b2, w3, b3, w4, b4)


def small_basic_block_ref(x_nchw, params):
    """Plain-JAX reference (lax convs) for correctness checking."""
    w1, b1, w2, b2, w3, b3, w4, b4 = params
    dn = ("NHWC", "HWIO", "NHWC")
    x = jnp.transpose(x_nchw, (0, 2, 3, 1))
    h = jax.lax.conv_general_dilated(
        x, w1[None, None], (1, 1), "VALID", dimension_numbers=dn) + b1
    h = jnp.maximum(h, 0.0)
    h = jax.lax.conv_general_dilated(
        h, w2[:, None], (1, 1), ((1, 1), (0, 0)), dimension_numbers=dn) + b2
    h = jnp.maximum(h, 0.0)
    h = jax.lax.conv_general_dilated(
        h, w3[None], (1, 1), ((0, 0), (1, 1)), dimension_numbers=dn) + b3
    h = jnp.maximum(h, 0.0)
    h = jax.lax.conv_general_dilated(
        h, w4[None, None], (1, 1), "VALID", dimension_numbers=dn) + b4
    return jnp.transpose(h, (0, 3, 1, 2))


if __name__ == "__main__":
    B, CH_IN, CH_OUT, H, W = 2, 4, 32, 16, 16

    key = jax.random.PRNGKey(0)
    kx, kp = jax.random.split(key)
    x = jax.random.normal(kx, (B, CH_IN, H, W), jnp.float32)
    params = init_params(kp, CH_IN, CH_OUT)

    ref = small_basic_block_ref(x, params)

    # Default path: whole batch merged onto lanes (N = B*H*W = 512), f32 MXU.
    out = jax.block_until_ready(small_basic_block_pallas(x, params))
    assert out.shape == (B, CH_OUT, H, W)
    assert jnp.allclose(out, ref, atol=1e-4, rtol=1e-4)

    # bf16 MXU-operand path (v6e/v7x fast path): f32 accumulate + f32 VPU math.
    out_bf16 = jax.block_until_ready(
        small_basic_block_pallas(x, params, use_bf16_matmul=True))
    assert jnp.allclose(out_bf16, ref, atol=5e-2, rtol=5e-2)

    # Split-batch path (>=2 'parallel' grid steps, e.g. to feed both v7x TCs).
    out_split = jax.block_until_ready(
        small_basic_block_pallas(x, params, images_per_block=1))
    assert jnp.allclose(out_split, ref, atol=1e-4, rtol=1e-4)

    print("KERNEL_OK")
</pallas_src>

<mosaic_0001>
module attributes {stable_mosaic.version = 11 : i64} {
  func.func @_small_basic_block_kernel(%arg0: i32, %arg1: memref<2x4x256xf32, #tpu.memory_space<vmem>>, %arg2: memref<88x8xf32, #tpu.memory_space<vmem>>, %arg3: memref<56x1xf32, #tpu.memory_space<vmem>>, %arg4: memref<2x32x256xf32, #tpu.memory_space<vmem>>) attributes {dimension_semantics = [#tpu.dimension_semantics<parallel>], iteration_bounds = array<i64: 1>, scalar_prefetch = 0 : i64, scratch_operands = 0 : i64, tpu.core_type = #tpu.core_type<tc>, window_params = [{transform_indices = @transform_0, window_bounds = array<i64: 2, 4, 256>}, {pipeline_mode = #tpu.pipeline_mode<synchronous>, transform_indices = @transform_1, window_bounds = array<i64: 88, 8>}, {pipeline_mode = #tpu.pipeline_mode<synchronous>, transform_indices = @transform_2, window_bounds = array<i64: 56, 1>}, {transform_indices = @transform_3, window_bounds = array<i64: 2, 32, 256>}]} {
    %c0 = arith.constant 0 : index
    %c0_0 = arith.constant 0 : index
    %c0_1 = arith.constant 0 : index
    %0 = vector.load %arg1[%c0, %c0_0, %c0_1] : memref<2x4x256xf32, #tpu.memory_space<vmem>>, vector<1x4x256xf32>
    %1 = vector.shape_cast %0 : vector<1x4x256xf32> to vector<4x256xf32>
    %c1 = arith.constant 1 : index
    %c0_2 = arith.constant 0 : index
    %c0_3 = arith.constant 0 : index
    %2 = vector.load %arg1[%c1, %c0_2, %c0_3] : memref<2x4x256xf32, #tpu.memory_space<vmem>>, vector<1x4x256xf32>
    %3 = vector.shape_cast %2 : vector<1x4x256xf32> to vector<4x256xf32>
    %4 = tpu.concatenate %1, %3 in 1 : vector<4x256xf32>, vector<4x256xf32> -> vector<4x512xf32>
    %c0_4 = arith.constant 0 : index
    %c0_5 = arith.constant 0 : index
    %5 = vector.load %arg2[%c0_4, %c0_5] : memref<88x8xf32, #tpu.memory_space<vmem>>, vector<8x4xf32>
    %c8 = arith.constant 8 : index
    %c0_6 = arith.constant 0 : index
    %6 = vector.load %arg2[%c8, %c0_6] : memref<88x8xf32, #tpu.memory_space<vmem>>, vector<24x8xf32>
    %c32 = arith.constant 32 : index
    %c0_7 = arith.constant 0 : index
    %7 = vector.load %arg2[%c32, %c0_7] : memref<88x8xf32, #tpu.memory_space<vmem>>, vector<24x8xf32>
    %c56 = arith.constant 56 : index
    %c0_8 = arith.constant 0 : index
    %8 = vector.load %arg2[%c56, %c0_8] : memref<88x8xf32, #tpu.memory_space<vmem>>, vector<32x8xf32>
    %c0_9 = arith.constant 0 : index
    %c0_10 = arith.constant 0 : index
    %9 = vector.load %arg3[%c0_9, %c0_10] : memref<56x1xf32, #tpu.memory_space<vmem>>, vector<8x1xf32>
    %c8_11 = arith.constant 8 : index
    %c0_12 = arith.constant 0 : index
    %10 = vector.load %arg3[%c8_11, %c0_12] : memref<56x1xf32, #tpu.memory_space<vmem>>, vector<8x1xf32>
    %c16 = arith.constant 16 : index
    %c0_13 = arith.constant 0 : index
    %11 = vector.load %arg3[%c16, %c0_13] : memref<56x1xf32, #tpu.memory_space<vmem>>, vector<8x1xf32>
    %c24 = arith.constant 24 : index
    %c0_14 = arith.constant 0 : index
    %12 = vector.load %arg3[%c24, %c0_14] : memref<56x1xf32, #tpu.memory_space<vmem>>, vector<32x1xf32>
    %13 = tpu.iota {dimensions = array<i32: 1>} : vector<8x512xi32>
    %c255_i32 = arith.constant 255 : i32
    %14 = vector.broadcast %c255_i32 : i32 to vector<8x512xi32>
    %15 = arith.andi %13, %14 : vector<8x512xi32>
    %c15_i32 = arith.constant 15 : i32
    %16 = vector.broadcast %c15_i32 : i32 to vector<8x512xi32>
    %17 = arith.andi %15, %16 : vector<8x512xi32>
    %c16_i32 = arith.constant 16 : i32
    %18 = vector.broadcast %c16_i32 : i32 to vector<8x512xi32>
    %19 = arith.cmpi sge, %15, %18 : vector<8x512xi32>
    %c240_i32 = arith.constant 240 : i32
    %20 = vector.broadcast %c240_i32 : i32 to vector<8x512xi32>
    %21 = arith.cmpi slt, %15, %20 : vector<8x512xi32>
    %c0_i32 = arith.constant 0 : i32
    %22 = vector.broadcast %c0_i32 : i32 to vector<8x512xi32>
    %23 = arith.cmpi ne, %17, %22 : vector<8x512xi32>
    %c15_i32_15 = arith.constant 15 : i32
    %24 = vector.broadcast %c15_i32_15 : i32 to vector<8x512xi32>
    %25 = arith.cmpi ne, %17, %24 : vector<8x512xi32>
    %cst = arith.constant dense<0.000000e+00> : vector<8x512xf32>
    %26 = tpu.matmul %5, %4, %cst {dimension_numbers = #tpu.dot_dimension_numbers<[1], [0], [0], [1], [0, 0, 1, 1], [], []>} : vector<8x4xf32>, vector<4x512xf32>, vector<8x512xf32> -> vector<8x512xf32>
    %27 = vector.broadcast %9 : vector<8x1xf32> to vector<8x512xf32>
    %28 = arith.addf %26, %27 : vector<8x512xf32>
    %cst_16 = arith.constant 0.000000e+00 : f32
    %29 = vector.broadcast %cst_16 : f32 to vector<8x512xf32>
    %30 = arith.maximumf %28, %29 : vector<8x512xf32>
    %cst_17 = arith.constant dense<0.000000e+00> : vector<24x512xf32>
    %31 = tpu.matmul %6, %30, %cst_17 {dimension_numbers = #tpu.dot_dimension_numbers<[1], [0], [0], [1], [0, 0, 1, 1], [], []>} : vector<24x8xf32>, vector<8x512xf32>, vector<24x512xf32> -> vector<24x512xf32>
    %32 = vector.extract_strided_slice %31 {offsets = [0, 0], sizes = [8, 512], strides = [1, 1]} : vector<24x512xf32> to vector<8x512xf32>
    %33 = vector.extract_strided_slice %31 {offsets = [8, 0], sizes = [8, 512], strides = [1, 1]} : vector<24x512xf32> to vector<8x512xf32>
    %34 = vector.extract_strided_slice %31 {offsets = [16, 0], sizes = [8, 512], strides = [1, 1]} : vector<24x512xf32> to vector<8x512xf32>
    %c16_i32_18 = arith.constant 16 : i32
    %35 = tpu.dynamic_rotate %32 by %c16_i32_18 dim 1 : vector<8x512xf32>, i32 -> vector<8x512xf32>
    %cst_19 = arith.constant 0.000000e+00 : f32
    %36 = vector.broadcast %cst_19 : f32 to vector<8x512xf32>
    %37 = arith.select %19, %35, %36 : vector<8x512xi1>, vector<8x512xf32>
    %38 = arith.addf %37, %33 : vector<8x512xf32>
    %c496_i32 = arith.constant 496 : i32
    %39 = tpu.dynamic_rotate %34 by %c496_i32 dim 1 : vector<8x512xf32>, i32 -> vector<8x512xf32>
    %cst_20 = arith.constant 0.000000e+00 : f32
    %40 = vector.broadcast %cst_20 : f32 to vector<8x512xf32>
    %41 = arith.select %21, %39, %40 : vector<8x512xi1>, vector<8x512xf32>
    %42 = arith.addf %38, %41 : vector<8x512xf32>
    %43 = vector.broadcast %10 : vector<8x1xf32> to vector<8x512xf32>
    %44 = arith.addf %42, %43 : vector<8x512xf32>
    %cst_21 = arith.constant 0.000000e+00 : f32
    %45 = vector.broadcast %cst_21 : f32 to vector<8x512xf32>
    %46 = arith.maximumf %44, %45 : vector<8x512xf32>
    %cst_22 = arith.constant dense<0.000000e+00> : vector<24x512xf32>
    %47 = tpu.matmul %7, %46, %cst_22 {dimension_numbers = #tpu.dot_dimension_numbers<[1], [0], [0], [1], [0, 0, 1, 1], [], []>} : vector<24x8xf32>, vector<8x512xf32>, vector<24x512xf32> -> vector<24x512xf32>
    %48 = vector.extract_strided_slice %47 {offsets = [0, 0], sizes = [8, 512], strides = [1, 1]} : vector<24x512xf32> to vector<8x512xf32>
    %49 = vector.extract_strided_slice %47 {offsets = [8, 0], sizes = [8, 512], strides = [1, 1]} : vector<24x512xf32> to vector<8x512xf32>
    %50 = vector.extract_strided_slice %47 {offsets = [16, 0], sizes = [8, 512], strides = [1, 1]} : vector<24x512xf32> to vector<8x512xf32>
    %c1_i32 = arith.constant 1 : i32
    %51 = tpu.dynamic_rotate %48 by %c1_i32 dim 1 : vector<8x512xf32>, i32 -> vector<8x512xf32>
    %cst_23 = arith.constant 0.000000e+00 : f32
    %52 = vector.broadcast %cst_23 : f32 to vector<8x512xf32>
    %53 = arith.select %23, %51, %52 : vector<8x512xi1>, vector<8x512xf32>
    %54 = arith.addf %53, %49 : vector<8x512xf32>
    %c511_i32 = arith.constant 511 : i32
    %55 = tpu.dynamic_rotate %50 by %c511_i32 dim 1 : vector<8x512xf32>, i32 -> vector<8x512xf32>
    %cst_24 = arith.constant 0.000000e+00 : f32
    %56 = vector.broadcast %cst_24 : f32 to vector<8x512xf32>
    %57 = arith.select %25, %55, %56 : vector<8x512xi1>, vector<8x512xf32>
    %58 = arith.addf %54, %57 : vector<8x512xf32>
    %59 = vector.broadcast %11 : vector<8x1xf32> to vector<8x512xf32>
    %60 = arith.addf %58, %59 : vector<8x512xf32>
    %cst_25 = arith.constant 0.000000e+00 : f32
    %61 = vector.broadcast %cst_25 : f32 to vector<8x512xf32>
    %62 = arith.maximumf %60, %61 : vector<8x512xf32>
    %cst_26 = arith.constant dense<0.000000e+00> : vector<32x512xf32>
    %63 = tpu.matmul %8, %62, %cst_26 {dimension_numbers = #tpu.dot_dimension_numbers<[1], [0], [0], [1], [0, 0, 1, 1], [], []>} : vector<32x8xf32>, vector<8x512xf32>, vector<32x512xf32> -> vector<32x512xf32>
    %64 = vector.broadcast %12 : vector<32x1xf32> to vector<32x512xf32>
    %65 = arith.addf %63, %64 : vector<32x512xf32>
    %66 = vector.extract_strided_slice %65 {offsets = [0, 0], sizes = [32, 256], strides = [1, 1]} : vector<32x512xf32> to vector<32x256xf32>
    %c0_27 = arith.constant 0 : index
    %c0_28 = arith.constant 0 : index
    %c0_29 = arith.constant 0 : index
    %67 = vector.load %arg4[%c0_27, %c0_28, %c0_29] : memref<2x32x256xf32, #tpu.memory_space<vmem>>, vector<1x32x256xf32>
    %68 = vector.shape_cast %67 : vector<1x32x256xf32> to vector<32x256xf32>
    %69 = vector.shape_cast %66 : vector<32x256xf32> to vector<1x32x256xf32>
    tpu.vector_store %arg4[%c0_27, %c0_28, %c0_29], %69 {strides = array<i32>} : memref<2x32x256xf32, #tpu.memory_space<vmem>>, vector<1x32x256xf32>,
    %70 = vector.extract_strided_slice %65 {offsets = [0, 256], sizes = [32, 256], strides = [1, 1]} : vector<32x512xf32> to vector<32x256xf32>
    %c1_30 = arith.constant 1 : index
    %c0_31 = arith.constant 0 : index
    %c0_32 = arith.constant 0 : index
    %71 = vector.load %arg4[%c1_30, %c0_31, %c0_32] : memref<2x32x256xf32, #tpu.memory_space<vmem>>, vector<1x32x256xf32>
    %72 = vector.shape_cast %71 : vector<1x32x256xf32> to vector<32x256xf32>
    %73 = vector.shape_cast %70 : vector<32x256xf32> to vector<1x32x256xf32>
    tpu.vector_store %arg4[%c1_30, %c0_31, %c0_32], %73 {strides = array<i32>} : memref<2x32x256xf32, #tpu.memory_space<vmem>>, vector<1x32x256xf32>,
    return
  }
  func.func @transform_0(%arg0: i32) -> (i32, i32, i32) {
    %c0_i32 = arith.constant 0 : i32
    %c0_i32_0 = arith.constant 0 : i32
    %c0_i32_1 = arith.constant 0 : i32
    return %arg0, %c0_i32, %c0_i32_0 : i32, i32, i32
  }
  func.func @transform_1(%arg0: i32) -> (i32, i32) {
    %c0_i32 = arith.constant 0 : i32
    %c0_i32_0 = arith.constant 0 : i32
    %c0_i32_1 = arith.constant 0 : i32
    return %c0_i32, %c0_i32_0 : i32, i32
  }
  func.func @transform_2(%arg0: i32) -> (i32, i32) {
    %c0_i32 = arith.constant 0 : i32
    %c0_i32_0 = arith.constant 0 : i32
    %c0_i32_1 = arith.constant 0 : i32
    return %c0_i32, %c0_i32_0 : i32, i32
  }
  func.func @transform_3(%arg0: i32) -> (i32, i32, i32) {
    %c0_i32 = arith.constant 0 : i32
    %c0_i32_0 = arith.constant 0 : i32
    %c0_i32_1 = arith.constant 0 : i32
    return %arg0, %c0_i32, %c0_i32_0 : i32, i32, i32
  }
}

</mosaic_0001>

<llo_original>
// kernel: tpu_custom_call.1
$region0: #{tpu_custom_call.1}
  #allocation0 [shape = 'u32[]', space=smem, size = 0x4, offset = 0x4, fixed_abs, tag = 'smem constant byte address 0x4 - core index']
  #allocation1 [shape = 'u32[144,128]{1,0:T(1,128)}', space=vmem, size = 0x12000, scoped, tag = 'internal scratch']
  %s0 = inlined_call_operand.vmem [shape: f32[2,4,256], index: 0, kind: input, shape index: {}]
  %s1 = inlined_call_operand.vmem [shape: f32[88,8], index: 1, kind: input, shape index: {}]
  %s2 = inlined_call_operand.vmem [shape: f32[56,1], index: 2, kind: input, shape index: {}]
  %s3 = inlined_call_operand.hbm [shape: f32[2,32,256], index: 3, kind: output, shape index: {}]
  %s4 = sld [smem:[#allocation0]]
  $region22: #{tpu_custom_call.1} parent=0
    _
  %s6 = ssub.s32 1, %s4
  %s7 = scalar_select 0, %s6, %s4
  $region1: #{tpu_custom_call.1} parent=0
    #allocation2 [shape = 'u8[65536]{0}', space=vmem, size = 0x10000, scoped, tag = 'output window, operand 0, single buffered']
    #allocation3 [shape = 's32[1]{0}', space=sflag, size = 0x4, scoped, tag = 'scoped memory for tpu_custom_call.1']
    %8 = vsyncpa [#allocation3], 0
    // Predicated region
    $region2: #{tpu_custom_call.1} parent=1 // pred_check
      _
    $region3: #{tpu_custom_call.1} parent=1 // pred_check_branch
      %10 = sbr.rel (0) target = $region5
    $region4: #{tpu_custom_call.1} parent=1 // pred_region
      _
    $region5: #{tpu_custom_call.1} parent=1 // pred_fallthru
      _
    // Predicated region
    $region6: #{tpu_custom_call.1} parent=1 // pred_check
      _
    $region7: #{tpu_custom_call.1} parent=1 // pred_check_branch
      %12 = sbr.rel (0) target = $region9
    $region8: #{tpu_custom_call.1} parent=1 // pred_region
      _
    $region9: #{tpu_custom_call.1} parent=1 // pred_fallthru
      _
    // Predicated region
    $region10: #{tpu_custom_call.1} parent=1 // pred_check
      _
    $region11: #{tpu_custom_call.1} parent=1 // pred_check_branch
      %14 = sbr.rel (0) target = $region13
    $region12: #{tpu_custom_call.1} parent=1 // pred_region
      _
    $region13: #{tpu_custom_call.1} parent=1 // pred_fallthru
      _
    %v15 = vld [vmem:[%s0] sm:$0xff]
    %s16 = scalar_lea.vmem %s0, 8
    %v17 = vld [vmem:[%s16] sm:$0xff]
    %v19 = vcombine.high %v15, %v15
    %v21 = vcombine.high %v17, %v17
    %v22 = vld [vmem:[%s1] sm:$0xff]
    %v23 = vld [vmem:[%s1 + $0x8] sm:$0xff]
    %v24 = vld [vmem:[%s1 + $0x10] sm:$0xff]
    %v25 = vld [vmem:[%s1 + $0x18] sm:$0xff]
    %v26 = vld [vmem:[%s1 + $0x20] sm:$0xff]
    %v27 = vld [vmem:[%s1 + $0x28] sm:$0xff]
    %v28 = vld [vmem:[%s1 + $0x30] sm:$0xff]
    %v29 = vld [vmem:[%s1 + $0x38] sm:$0xff]
    %v30 = vld [vmem:[%s1 + $0x40] sm:$0xff]
    %v31 = vld [vmem:[%s1 + $0x48] sm:$0xff]
    %v32 = vld [vmem:[%s1 + $0x50] sm:$0xff]
    %v33 = vld [vmem:[%s2] sm:$0xff]
    %v34 = vld [vmem:[%s2 + $0x8] sm:$0xff]
    %v35 = vld [vmem:[%s2 + $0x10] sm:$0xff]
    %v36 = vld [vmem:[%s2 + $0x18] sm:$0xff]
    %v37 = vld [vmem:[%s2 + $0x20] sm:$0xff]
    %v38 = vld [vmem:[%s2 + $0x28] sm:$0xff]
    %v39 = vld [vmem:[%s2 + $0x30] sm:$0xff]
    %v40 = vlaneseq
    %v41 = vand.u32 %v40, 127
    %v42 = vadd.s32 %v41, 128
    %v43 = vadd.s32 %v41, 256
    %v44 = vadd.s32 %v41, 384
    %v45 = vand.u32 %v41, 255
    %v46 = vand.u32 %v42, 255
    %v47 = vand.u32 %v43, 255
    %v48 = vand.u32 %v44, 255
    %v49 = vand.u32 %v45, 15
    %v50 = vand.u32 %v46, 15
    %v51 = vand.u32 %v47, 15
    %v52 = vand.u32 %v48, 15
    %vm53 = vcmp.ge.s32.totalorder %v45, 16
    %vm54 = vcmp.ge.s32.totalorder %v46, 16
    %vm55 = vcmp.ge.s32.totalorder %v47, 16
    %vm56 = vcmp.ge.s32.totalorder %v48, 16
    %vm57 = vcmp.lt.s32.totalorder %v45, 240
    %vm58 = vcmp.lt.s32.totalorder %v46, 240
    %vm59 = vcmp.lt.s32.totalorder %v47, 240
    %vm60 = vcmp.lt.s32.totalorder %v48, 240
    %vm61 = vcmp.ne.s32.totalorder %v49, 0
    %vm62 = vcmp.ne.s32.totalorder %v50, 0
    %vm63 = vcmp.ne.s32.totalorder %v51, 0
    %vm64 = vcmp.ne.s32.totalorder %v52, 0
    %vm65 = vcmp.ne.s32.totalorder %v49, 15
    %vm66 = vcmp.ne.s32.totalorder %v50, 15
    %vm67 = vcmp.ne.s32.totalorder %v51, 15
    %vm68 = vcmp.ne.s32.totalorder %v52, 15
    %70 = vset.pattern.permute.xlu0 0
    %71 = vperm.xlu0 %70, %v33
    %v72 = vpop.permute.xlu0 %71
    %vm74 = vcmask 31744
    %v76 = vsel %vm74, %v22, 0
    %vm78 = vcmask 1043456
    %v79 = vsel %vm78, %v15, 0
    %v81 = vsel %vm78, %v19, 0
    %v83 = vsel %vm78, %v17, 0
    %v85 = vsel %vm78, %v21, 0
    %87 = vmatprep.subr.mxu0 %v81
    %88 = vmatpush1.msra.mxu0 %v79
    %89 = vmatprep.subr.mxu0 0.0
    %90 = vmatpush1.msra.mxu0 0.0
    %91 = vmatprep.subr.mxu0 0.0
    %92 = vmatpush1.msra.mxu0 0.0
    %93 = vmatprep.subr.mxu0 0.0
    %94 = vmatpush1.msra.mxu0 0.0
    %95 = vmatprep.subr.mxu0 0.0
    %96 = vmatpush1.msra.mxu0 0.0
    %97 = vmatprep.subr.mxu0 0.0
    %98 = vmatpush1.msra.mxu0 0.0
    %99 = vmatprep.subr.mxu0 0.0
    %100 = vmatpush1.msra.mxu0 0.0
    %101 = vmatprep.subr.mxu0 0.0
    %102 = vmatpush1.msra.mxu0 0.0
    %103 = vmatprep.subr.mxu0 0.0
    %104 = vmatpush1.msra.mxu0 0.0
    %105 = vmatprep.subr.mxu0 0.0
    %106 = vmatpush1.msra.mxu0 0.0
    %107 = vmatprep.subr.mxu0 0.0
    %108 = vmatpush1.msra.mxu0 0.0
    %109 = vmatprep.subr.mxu0 0.0
    %110 = vmatpush1.msra.mxu0 0.0
    %111 = vmatprep.subr.mxu0 0.0
    %112 = vmatpush1.msra.mxu0 0.0
    %113 = vmatprep.subr.mxu0 0.0
    %114 = vmatpush1.msra.mxu0 0.0
    %115 = vmatprep.subr.mxu0 0.0
    %116 = vmatpush1.msra.mxu0 0.0
    %117 = vmatprep.subr.mxu0 0.0
    %118 = vmatpush1.msra.mxu0 0.0
    %119 = vmatprep.subr.mxu0 0.0
    %120 = vmatpush1.msra.mxu0 0.0
    %121 = vmatprep.subr.mxu0 0.0
    %122 = vmatpush1.msra.mxu0 0.0
    %123 = vmatprep.subr.mxu0 0.0
    %124 = vmatpush1.msra.mxu0 0.0
    %125 = vmatprep.subr.mxu0 0.0
    %126 = vmatpush1.msra.mxu0 0.0
    %127 = vmatprep.subr.mxu0 0.0
    %128 = vmatpush1.msra.mxu0 0.0
    %129 = vmatprep.subr.mxu0 0.0
    %130 = vmatpush1.msra.mxu0 0.0
    %131 = vmatprep.subr.mxu0 0.0
    %132 = vmatpush1.msra.mxu0 0.0
    %133 = vmatprep.subr.mxu0 0.0
    %134 = vmatpush1.msra.mxu0 0.0
    %135 = vmatprep.subr.mxu0 0.0
    %136 = vmatpush1.msra.mxu0 0.0
    %137 = vmatprep.subr.mxu0 0.0
    %138 = vmatpush1.msra.mxu0 0.0
    %139 = vmatprep.subr.mxu0 0.0
    %140 = vmatpush1.msra.mxu0 0.0
    %141 = vmatprep.subr.mxu0 0.0
    %142 = vmatpush1.msra.mxu0 0.0
    %143 = vmatprep.subr.mxu0 0.0
    %144 = vmatpush1.msra.mxu0 0.0
    %145 = vmatprep.subr.mxu0 0.0
    %146 = vmatpush1.msra.mxu0 0.0
    %147 = vmatprep.subr.mxu0 0.0
    %148 = vmatpush1.msra.mxu0 0.0
    %149 = vmatprep.subr.mxu0 0.0
    %150 = vmatpush1.msra.mxu0 0.0
    %151 = vmatprep.mubr.f32.mxu0 0.0
    %152 = vmatmul.mubr.f32.gmra.mrb[0].mxu0 %v76
    %v153 = vpop.f32.mrb[0].mxu0
    %v154 = vadd.f32 %v72, %v153
    %v155 = vpop.f32.mrb[0].mxu0
    %v156 = vadd.f32 %v72, %v155
    %157 = vdwg.mxu0
    %158 = vmatprep.subr.mxu0 %v85
    %159 = vmatpush1.msra.mxu0 %v83
    %160 = vmatprep.subr.mxu0 0.0
    %161 = vmatpush1.msra.mxu0 0.0
    %162 = vmatprep.subr.mxu0 0.0
    %163 = vmatpush1.msra.mxu0 0.0
    %164 = vmatprep.subr.mxu0 0.0
    %165 = vmatpush1.msra.mxu0 0.0
    %166 = vmatprep.subr.mxu0 0.0
    %167 = vmatpush1.msra.mxu0 0.0
    %168 = vmatprep.subr.mxu0 0.0
    %169 = vmatpush1.msra.mxu0 0.0
    %170 = vmatprep.subr.mxu0 0.0
    %171 = vmatpush1.msra.mxu0 0.0
    %172 = vmatprep.subr.mxu0 0.0
    %173 = vmatpush1.msra.mxu0 0.0
    %174 = vmatprep.subr.mxu0 0.0
    %175 = vmatpush1.msra.mxu0 0.0
    %176 = vmatprep.subr.mxu0 0.0
    %177 = vmatpush1.msra.mxu0 0.0
    %178 = vmatprep.subr.mxu0 0.0
    %179 = vmatpush1.msra.mxu0 0.0
    %180 = vmatprep.subr.mxu0 0.0
    %181 = vmatpush1.msra.mxu0 0.0
    %182 = vmatprep.subr.mxu0 0.0
    %183 = vmatpush1.msra.mxu0 0.0
    %184 = vmatprep.subr.mxu0 0.0
    %185 = vmatpush1.msra.mxu0 0.0
    %186 = vmatprep.subr.mxu0 0.0
    %187 = vmatpush1.msra.mxu0 0.0
    %188 = vmatprep.subr.mxu0 0.0
    %189 = vmatpush1.msra.mxu0 0.0
    %190 = vmatprep.subr.mxu0 0.0
    %191 = vmatpush1.msra.mxu0 0.0
    %192 = vmatprep.subr.mxu0 0.0
    %193 = vmatpush1.msra.mxu0 0.0
    %194 = vmatprep.subr.mxu0 0.0
    %195 = vmatpush1.msra.mxu0 0.0
    %196 = vmatprep.subr.mxu0 0.0
    %197 = vmatpush1.msra.mxu0 0.0
    %198 = vmatprep.subr.mxu0 0.0
    %199 = vmatpush1.msra.mxu0 0.0
    %200 = vmatprep.subr.mxu0 0.0
    %201 = vmatpush1.msra.mxu0 0.0
    %202 = vmatprep.subr.mxu0 0.0
    %203 = vmatpush1.msra.mxu0 0.0
    %204 = vmatprep.subr.mxu0 0.0
    %205 = vmatpush1.msra.mxu0 0.0
    %206 = vmatprep.subr.mxu0 0.0
    %207 = vmatpush1.msra.mxu0 0.0
    %208 = vmatprep.subr.mxu0 0.0
    %209 = vmatpush1.msra.mxu0 0.0
    %210 = vmatprep.subr.mxu0 0.0
    %211 = vmatpush1.msra.mxu0 0.0
    %212 = vmatprep.subr.mxu0 0.0
    %213 = vmatpush1.msra.mxu0 0.0
    %214 = vmatprep.subr.mxu0 0.0
    %215 = vmatpush1.msra.mxu0 0.0
    %216 = vmatprep.subr.mxu0 0.0
    %217 = vmatpush1.msra.mxu0 0.0
    %218 = vmatprep.subr.mxu0 0.0
    %219 = vmatpush1.msra.mxu0 0.0
    %220 = vmatprep.subr.mxu0 0.0
    %221 = vmatpush1.msra.mxu0 0.0
    %222 = vmatprep.mubr.f32.mxu0 0.0
    %223 = vmatmul.mubr.f32.gmra.mrb[0].mxu0 %v76
    %v224 = vpop.f32.mrb[0].mxu0
    %v225 = vadd.f32 %v72, %v224
    %v226 = vpop.f32.mrb[0].mxu0
    %v227 = vadd.f32 %v72, %v226
    %228 = vdwg.mxu0
    %v229 = vmax.f32 %v154, 0.0
    %v230 = vmax.f32 %v156, 0.0
    %v231 = vmax.f32 %v225, 0.0
    %v232 = vmax.f32 %v227, 0.0
    %vm233 = vcmask 64512
    %v235 = vsel %vm233, %v23, 0
    %v238 = vsel %vm233, %v24, 0
    %v241 = vsel %vm233, %v25, 0
    %243 = vmatprep.subr.mxu0 %v230
    %244 = vmatpush1.msra.mxu0 %v229
    %245 = vmatprep.subr.mxu0 0.0
    %246 = vmatpush1.msra.mxu0 0.0
    %247 = vmatprep.subr.mxu0 0.0
    %248 = vmatpush1.msra.mxu0 0.0
    %249 = vmatprep.subr.mxu0 0.0
    %250 = vmatpush1.msra.mxu0 0.0
    %251 = vmatprep.subr.mxu0 0.0
    %252 = vmatpush1.msra.mxu0 0.0
    %253 = vmatprep.subr.mxu0 0.0
    %254 = vmatpush1.msra.mxu0 0.0
    %255 = vmatprep.subr.mxu0 0.0
    %256 = vmatpush1.msra.mxu0 0.0
    %257 = vmatprep.subr.mxu0 0.0
    %258 = vmatpush1.msra.mxu0 0.0
    %259 = vmatprep.subr.mxu0 0.0
    %260 = vmatpush1.msra.mxu0 0.0
    %261 = vmatprep.subr.mxu0 0.0
    %262 = vmatpush1.msra.mxu0 0.0
    %263 = vmatprep.subr.mxu0 0.0
    %264 = vmatpush1.msra.mxu0 0.0
    %265 = vmatprep.subr.mxu0 0.0
    %266 = vmatpush1.msra.mxu0 0.0
    %267 = vmatprep.subr.mxu0 0.0
    %268 = vmatpush1.msra.mxu0 0.0
    %269 = vmatprep.subr.mxu0 0.0
    %270 = vmatpush1.msra.mxu0 0.0
    %271 = vmatprep.subr.mxu0 0.0
    %272 = vmatpush1.msra.mxu0 0.0
    %273 = vmatprep.subr.mxu0 0.0
    %274 = vmatpush1.msra.mxu0 0.0
    %275 = vmatprep.subr.mxu0 0.0
    %276 = vmatpush1.msra.mxu0 0.0
    %277 = vmatprep.subr.mxu0 0.0
    %278 = vmatpush1.msra.mxu0 0.0
    %279 = vmatprep.subr.mxu0 0.0
    %280 = vmatpush1.msra.mxu0 0.0
    %281 = vmatprep.subr.mxu0 0.0
    %282 = vmatpush1.msra.mxu0 0.0
    %283 = vmatprep.subr.mxu0 0.0
    %284 = vmatpush1.msra.mxu0 0.0
    %285 = vmatprep.subr.mxu0 0.0
    %286 = vmatpush1.msra.mxu0 0.0
    %287 = vmatprep.subr.mxu0 0.0
    %288 = vmatpush1.msra.mxu0 0.0
    %289 = vmatprep.subr.mxu0 0.0
    %290 = vmatpush1.msra.mxu0 0.0
    %291 = vmatprep.subr.mxu0 0.0
    %292 = vmatpush1.msra.mxu0 0.0
    %293 = vmatprep.subr.mxu0 0.0
    %294 = vmatpush1.msra.mxu0 0.0
    %295 = vmatprep.subr.mxu0 0.0
    %296 = vmatpush1.msra.mxu0 0.0
    %297 = vmatprep.subr.mxu0 0.0
    %298 = vmatpush1.msra.mxu0 0.0
    %299 = vmatprep.subr.mxu0 0.0
    %300 = vmatpush1.msra.mxu0 0.0
    %301 = vmatprep.subr.mxu0 0.0
    %302 = vmatpush1.msra.mxu0 0.0
    %303 = vmatprep.subr.mxu0 0.0
    %304 = vmatpush1.msra.mxu0 0.0
    %305 = vmatprep.subr.mxu0 0.0
    %306 = vmatpush1.msra.mxu0 0.0
    %307 = vmatprep.mubr.f32.mxu0 0.0
    %308 = vmatmul.mubr.f32.gmra.mrb[0].mxu0 %v235
    %v309 = vpop.f32.mrb[0].mxu0
    %v310 = vadd.f32 0.0, %v309
    %v311 = vpop.f32.mrb[0].mxu0
    %v312 = vadd.f32 0.0, %v311
    %313 = vmatprep.mubr.f32.mxu0 0.0
    %314 = vmatmul.mubr.f32.gmra.mrb[0].mxu0 %v238
    %v315 = vpop.f32.mrb[0].mxu0
    %v316 = vadd.f32 0.0, %v315
    %v317 = vpop.f32.mrb[0].mxu0
    %v318 = vadd.f32 0.0, %v317
    %319 = vmatprep.mubr.f32.mxu0 0.0
    %320 = vmatmul.mubr.f32.gmra.mrb[0].mxu0 %v241
    %v321 = vpop.f32.mrb[0].mxu0
    %v322 = vadd.f32 0.0, %v321
    %v323 = vpop.f32.mrb[0].mxu0
    %v324 = vadd.f32 0.0, %v323
    %325 = vdwg.mxu0
    %326 = vmatprep.subr.mxu0 %v232
    %327 = vmatpush1.msra.mxu0 %v231
    %328 = vmatprep.subr.mxu0 0.0
    %329 = vmatpush1.msra.mxu0 0.0
    %330 = vmatprep.subr.mxu0 0.0
    %331 = vmatpush1.msra.mxu0 0.0
    %332 = vmatprep.subr.mxu0 0.0
    %333 = vmatpush1.msra.mxu0 0.0
    %334 = vmatprep.subr.mxu0 0.0
    %335 = vmatpush1.msra.mxu0 0.0
    %336 = vmatprep.subr.mxu0 0.0
    %337 = vmatpush1.msra.mxu0 0.0
    %338 = vmatprep.subr.mxu0 0.0
    %339 = vmatpush1.msra.mxu0 0.0
    %340 = vmatprep.subr.mxu0 0.0
    %341 = vmatpush1.msra.mxu0 0.0
    %342 = vmatprep.subr.mxu0 0.0
    %343 = vmatpush1.msra.mxu0 0.0
    %344 = vmatprep.subr.mxu0 0.0
    %345 = vmatpush1.msra.mxu0 0.0
    %346 = vmatprep.subr.mxu0 0.0
    %347 = vmatpush1.msra.mxu0 0.0
    %348 = vmatprep.subr.mxu0 0.0
    %349 = vmatpush1.msra.mxu0 0.0
    %350 = vmatprep.subr.mxu0 0.0
    %351 = vmatpush1.msra.mxu0 0.0
    %352 = vmatprep.subr.mxu0 0.0
    %353 = vmatpush1.msra.mxu0 0.0
    %354 = vmatprep.subr.mxu0 0.0
    %355 = vmatpush1.msra.mxu0 0.0
    %356 = vmatprep.subr.mxu0 0.0
    %357 = vmatpush1.msra.mxu0 0.0
    %358 = vmatprep.subr.mxu0 0.0
    %359 = vmatpush1.msra.mxu0 0.0
    %360 = vmatprep.subr.mxu0 0.0
    %361 = vmatpush1.msra.mxu0 0.0
    %362 = vmatprep.subr.mxu0 0.0
    %363 = vmatpush1.msra.mxu0 0.0
    %364 = vmatprep.subr.mxu0 0.0
    %365 = vmatpush1.msra.mxu0 0.0
    %366 = vmatprep.subr.mxu0 0.0
    %367 = vmatpush1.msra.mxu0 0.0
    %368 = vmatprep.subr.mxu0 0.0
    %369 = vmatpush1.msra.mxu0 0.0
    %370 = vmatprep.subr.mxu0 0.0
    %371 = vmatpush1.msra.mxu0 0.0
    %372 = vmatprep.subr.mxu0 0.0
    %373 = vmatpush1.msra.mxu0 0.0
    %374 = vmatprep.subr.mxu0 0.0
    %375 = vmatpush1.msra.mxu0 0.0
    %376 = vmatprep.subr.mxu0 0.0
    %377 = vmatpush1.msra.mxu0 0.0
    %378 = vmatprep.subr.mxu0 0.0
    %379 = vmatpush1.msra.mxu0 0.0
    %380 = vmatprep.subr.mxu0 0.0
    %381 = vmatpush1.msra.mxu0 0.0
    %382 = vmatprep.subr.mxu0 0.0
    %383 = vmatpush1.msra.mxu0 0.0
    %384 = vmatprep.subr.mxu0 0.0
    %385 = vmatpush1.msra.mxu0 0.0
    %386 = vmatprep.subr.mxu0 0.0
    %387 = vmatpush1.msra.mxu0 0.0
    %388 = vmatprep.subr.mxu0 0.0
    %389 = vmatpush1.msra.mxu0 0.0
    %390 = vmatprep.mubr.f32.mxu0 0.0
    %391 = vmatmul.mubr.f32.gmra.mrb[0].mxu0 %v235
    %v392 = vpop.f32.mrb[0].mxu0
    %v393 = vadd.f32 0.0, %v392
    %v394 = vpop.f32.mrb[0].mxu0
    %v395 = vadd.f32 0.0, %v394
    %396 = vmatprep.mubr.f32.mxu0 0.0
    %397 = vmatmul.mubr.f32.gmra.mrb[0].mxu0 %v238
    %v398 = vpop.f32.mrb[0].mxu0
    %v399 = vadd.f32 0.0, %v398
    %v400 = vpop.f32.mrb[0].mxu0
    %v401 = vadd.f32 0.0, %v400
    %402 = vmatprep.mubr.f32.mxu0 0.0
    %403 = vmatmul.mubr.f32.gmra.mrb[0].mxu0 %v241
    %v404 = vpop.f32.mrb[0].mxu0
    %v405 = vadd.f32 0.0, %v404
    %v406 = vpop.f32.mrb[0].mxu0
    %v407 = vadd.f32 0.0, %v406
    %408 = vdwg.mxu0
    %409 = vrot.lane.b32.xlu0 %v310, 16
    %v410 = vpop.permute.xlu0 %409
    %411 = vrot.lane.b32.xlu0 %v312, 16
    %v412 = vpop.permute.xlu0 %411
    %413 = vrot.lane.b32.xlu0 %v393, 16
    %v414 = vpop.permute.xlu0 %413
    %415 = vrot.lane.b32.xlu0 %v395, 16
    %v416 = vpop.permute.xlu0 %415
    %vm417 = vcmp.lt.s32.totalorder %v41, 16
    %v418 = vsel %vm417, %v414, %v416
    %v419 = vsel %vm417, %v412, %v414
    %v420 = vsel %vm417, %v410, %v412
    %v421 = vsel %vm417, %v416, %v410
    %v422 = vsel %vm53, %v421, 0.0
    %v423 = vsel %vm54, %v420, 0.0
    %v424 = vsel %vm55, %v419, 0.0
    %v425 = vsel %vm56, %v418, 0.0
    %v426 = vadd.f32 %v422, %v316
    %v427 = vadd.f32 %v423, %v318
    %v428 = vadd.f32 %v424, %v399
    %v429 = vadd.f32 %v425, %v401
    %430 = vrot.lane.b32.xlu0 %v322, 112
    %v431 = vpop.permute.xlu0 %430
    %432 = vrot.lane.b32.xlu0 %v324, 112
    %v433 = vpop.permute.xlu0 %432
    %434 = vrot.lane.b32.xlu0 %v405, 112
    %v435 = vpop.permute.xlu0 %434
    %436 = vrot.lane.b32.xlu0 %v407, 112
    %v437 = vpop.permute.xlu0 %436
    %vm438 = vcmp.lt.s32.totalorder %v41, 112
    %v439 = vsel %vm438, %v435, %v437
    %v440 = vsel %vm438, %v433, %v435
    %v441 = vsel %vm438, %v431, %v433
    %v442 = vsel %vm438, %v437, %v431
    %v443 = vsel %vm57, %v441, 0.0
    %v444 = vsel %vm58, %v440, 0.0
    %v445 = vsel %vm59, %v439, 0.0
    %v446 = vsel %vm60, %v442, 0.0
    %v447 = vadd.f32 %v426, %v443
    %v448 = vadd.f32 %v427, %v444
    %v449 = vadd.f32 %v428, %v445
    %v450 = vadd.f32 %v429, %v446
    %452 = vset.pattern.permute.xlu0 0
    %453 = vperm.xlu0 %452, %v34
    %v454 = vpop.permute.xlu0 %453
    %v456 = vadd.f32 %v447, %v454
    %v457 = vadd.f32 %v448, %v454
    %v458 = vadd.f32 %v449, %v454
    %v459 = vadd.f32 %v450, %v454
    %v460 = vmax.f32 %v456, 0.0
    %v461 = vmax.f32 %v457, 0.0
    %v462 = vmax.f32 %v458, 0.0
    %v463 = vmax.f32 %v459, 0.0
    %v465 = vsel %vm233, %v26, 0
    %v468 = vsel %vm233, %v27, 0
    %v471 = vsel %vm233, %v28, 0
    %473 = vmatprep.subr.mxu0 %v461
    %474 = vmatpush1.msra.mxu0 %v460
    %475 = vmatprep.subr.mxu0 0.0
    %476 = vmatpush1.msra.mxu0 0.0
    %477 = vmatprep.subr.mxu0 0.0
    %478 = vmatpush1.msra.mxu0 0.0
    %479 = vmatprep.subr.mxu0 0.0
    %480 = vmatpush1.msra.mxu0 0.0
    %481 = vmatprep.subr.mxu0 0.0
    %482 = vmatpush1.msra.mxu0 0.0
    %483 = vmatprep.subr.mxu0 0.0
    %484 = vmatpush1.msra.mxu0 0.0
    %485 = vmatprep.subr.mxu0 0.0
    %486 = vmatpush1.msra.mxu0 0.0
    %487 = vmatprep.subr.mxu0 0.0
    %488 = vmatpush1.msra.mxu0 0.0
    %489 = vmatprep.subr.mxu0 0.0
    %490 = vmatpush1.msra.mxu0 0.0
    %491 = vmatprep.subr.mxu0 0.0
    %492 = vmatpush1.msra.mxu0 0.0
    %493 = vmatprep.subr.mxu0 0.0
    %494 = vmatpush1.msra.mxu0 0.0
    %495 = vmatprep.subr.mxu0 0.0
    %496 = vmatpush1.msra.mxu0 0.0
    %497 = vmatprep.subr.mxu0 0.0
    %498 = vmatpush1.msra.mxu0 0.0
    %499 = vmatprep.subr.mxu0 0.0
    %500 = vmatpush1.msra.mxu0 0.0
    %501 = vmatprep.subr.mxu0 0.0
    %502 = vmatpush1.msra.mxu0 0.0
    %503 = vmatprep.subr.mxu0 0.0
    %504 = vmatpush1.msra.mxu0 0.0
    %505 = vmatprep.subr.mxu0 0.0
    %506 = vmatpush1.msra.mxu0 0.0
    %507 = vmatprep.subr.mxu0 0.0
    %508 = vmatpush1.msra.mxu0 0.0
    %509 = vmatprep.subr.mxu0 0.0
    %510 = vmatpush1.msra.mxu0 0.0
    %511 = vmatprep.subr.mxu0 0.0
    %512 = vmatpush1.msra.mxu0 0.0
    %513 = vmatprep.subr.mxu0 0.0
    %514 = vmatpush1.msra.mxu0 0.0
    %515 = vmatprep.subr.mxu0 0.0
    %516 = vmatpush1.msra.mxu0 0.0
    %517 = vmatprep.subr.mxu0 0.0
    %518 = vmatpush1.msra.mxu0 0.0
    %519 = vmatprep.subr.mxu0 0.0
    %520 = vmatpush1.msra.mxu0 0.0
    %521 = vmatprep.subr.mxu0 0.0
    %522 = vmatpush1.msra.mxu0 0.0
    %523 = vmatprep.subr.mxu0 0.0
    %524 = vmatpush1.msra.mxu0 0.0
    %525 = vmatprep.subr.mxu0 0.0
    %526 = vmatpush1.msra.mxu0 0.0
    %527 = vmatprep.subr.mxu0 0.0
    %528 = vmatpush1.msra.mxu0 0.0
    %529 = vmatprep.subr.mxu0 0.0
    %530 = vmatpush1.msra.mxu0 0.0
    %531 = vmatprep.subr.mxu0 0.0
    %532 = vmatpush1.msra.mxu0 0.0
    %533 = vmatprep.subr.mxu0 0.0
    %534 = vmatpush1.msra.mxu0 0.0
    %535 = vmatprep.subr.mxu0 0.0
    %536 = vmatpush1.msra.mxu0 0.0
    %537 = vmatprep.mubr.f32.mxu0 0.0
    %538 = vmatmul.mubr.f32.gmra.mrb[0].mxu0 %v465
    %v539 = vpop.f32.mrb[0].mxu0
    %v540 = vadd.f32 0.0, %v539
    %v541 = vpop.f32.mrb[0].mxu0
    %v542 = vadd.f32 0.0, %v541
    %543 = vmatprep.mubr.f32.mxu0 0.0
    %544 = vmatmul.mubr.f32.gmra.mrb[0].mxu0 %v468
    %v545 = vpop.f32.mrb[0].mxu0
    %v546 = vadd.f32 0.0, %v545
    %v547 = vpop.f32.mrb[0].mxu0
    %v548 = vadd.f32 0.0, %v547
    %549 = vmatprep.mubr.f32.mxu0 0.0
    %550 = vmatmul.mubr.f32.gmra.mrb[0].mxu0 %v471
    %v551 = vpop.f32.mrb[0].mxu0
    %v552 = vadd.f32 0.0, %v551
    %v553 = vpop.f32.mrb[0].mxu0
    %v554 = vadd.f32 0.0, %v553
    %555 = vdwg.mxu0
    %556 = vmatprep.subr.mxu0 %v463
    %557 = vmatpush1.msra.mxu0 %v462
    %558 = vmatprep.subr.mxu0 0.0
    %559 = vmatpush1.msra.mxu0 0.0
    %560 = vmatprep.subr.mxu0 0.0
    %561 = vmatpush1.msra.mxu0 0.0
    %562 = vmatprep.subr.mxu0 0.0
    %563 = vmatpush1.msra.mxu0 0.0
    %564 = vmatprep.subr.mxu0 0.0
    %565 = vmatpush1.msra.mxu0 0.0
    %566 = vmatprep.subr.mxu0 0.0
    %567 = vmatpush1.msra.mxu0 0.0
    %568 = vmatprep.subr.mxu0 0.0
    %569 = vmatpush1.msra.mxu0 0.0
    %570 = vmatprep.subr.mxu0 0.0
    %571 = vmatpush1.msra.mxu0 0.0
    %572 = vmatprep.subr.mxu0 0.0
    %573 = vmatpush1.msra.mxu0 0.0
    %574 = vmatprep.subr.mxu0 0.0
    %575 = vmatpush1.msra.mxu0 0.0
    %576 = vmatprep.subr.mxu0 0.0
    %577 = vmatpush1.msra.mxu0 0.0
    %578 = vmatprep.subr.mxu0 0.0
    %579 = vmatpush1.msra.mxu0 0.0
    %580 = vmatprep.subr.mxu0 0.0
    %581 = vmatpush1.msra.mxu0 0.0
    %582 = vmatprep.subr.mxu0 0.0
    %583 = vmatpush1.msra.mxu0 0.0
    %584 = vmatprep.subr.mxu0 0.0
    %585 = vmatpush1.msra.mxu0 0.0
    %586 = vmatprep.subr.mxu0 0.0
    %587 = vmatpush1.msra.mxu0 0.0
    %588 = vmatprep.subr.mxu0 0.0
    %589 = vmatpush1.msra.mxu0 0.0
    %590 = vmatprep.subr.mxu0 0.0
    %591 = vmatpush1.msra.mxu0 0.0
    %592 = vmatprep.subr.mxu0 0.0
    %593 = vmatpush1.msra.mxu0 0.0
    %594 = vmatprep.subr.mxu0 0.0
    %595 = vmatpush1.msra.mxu0 0.0
    %596 = vmatprep.subr.mxu0 0.0
    %597 = vmatpush1.msra.mxu0 0.0
    %598 = vmatprep.subr.mxu0 0.0
    %599 = vmatpush1.msra.mxu0 0.0
    %600 = vmatprep.subr.mxu0 0.0
    %601 = vmatpush1.msra.mxu0 0.0
    %602 = vmatprep.subr.mxu0 0.0
    %603 = vmatpush1.msra.mxu0 0.0
    %604 = vmatprep.subr.mxu0 0.0
    %605 = vmatpush1.msra.mxu0 0.0
    %606 = vmatprep.subr.mxu0 0.0
    %607 = vmatpush1.msra.mxu0 0.0
    %608 = vmatprep.subr.mxu0 0.0
    %609 = vmatpush1.msra.mxu0 0.0
    %610 = vmatprep.subr.mxu0 0.0
    %611 = vmatpush1.msra.mxu0 0.0
    %612 = vmatprep.subr.mxu0 0.0
    %613 = vmatpush1.msra.mxu0 0.0
    %614 = vmatprep.subr.mxu0 0.0
    %615 = vmatpush1.msra.mxu0 0.0
    %616 = vmatprep.subr.mxu0 0.0
    %617 = vmatpush1.msra.mxu0 0.0
    %618 = vmatprep.subr.mxu0 0.0
    %619 = vmatpush1.msra.mxu0 0.0
    %620 = vmatprep.mubr.f32.mxu0 0.0
    %621 = vmatmul.mubr.f32.gmra.mrb[0].mxu0 %v465
    %v622 = vpop.f32.mrb[0].mxu0
    %v623 = vadd.f32 0.0, %v622
    %v624 = vpop.f32.mrb[0].mxu0
    %v625 = vadd.f32 0.0, %v624
    %626 = vmatprep.mubr.f32.mxu0 0.0
    %627 = vmatmul.mubr.f32.gmra.mrb[0].mxu0 %v468
    %v628 = vpop.f32.mrb[0].mxu0
    %v629 = vadd.f32 0.0, %v628
    %v630 = vpop.f32.mrb[0].mxu0
    %v631 = vadd.f32 0.0, %v630
    %632 = vmatprep.mubr.f32.mxu0 0.0
    %633 = vmatmul.mubr.f32.gmra.mrb[0].mxu0 %v471
    %v634 = vpop.f32.mrb[0].mxu0
    %v635 = vadd.f32 0.0, %v634
    %v636 = vpop.f32.mrb[0].mxu0
    %v637 = vadd.f32 0.0, %v636
    %638 = vdwg.mxu0
    %639 = vrot.lane.b32.xlu0 %v540, 1
    %v640 = vpop.permute.xlu0 %639
    %641 = vrot.lane.b32.xlu0 %v542, 1
    %v642 = vpop.permute.xlu0 %641
    %643 = vrot.lane.b32.xlu0 %v623, 1
    %v644 = vpop.permute.xlu0 %643
    %645 = vrot.lane.b32.xlu0 %v625, 1
    %v646 = vpop.permute.xlu0 %645
    %vm647 = vcmp.lt.s32.totalorder %v41, 1
    %v648 = vsel %vm647, %v644, %v646
    %v649 = vsel %vm647, %v642, %v644
    %v650 = vsel %vm647, %v640, %v642
    %v651 = vsel %vm647, %v646, %v640
    %v652 = vsel %vm61, %v651, 0.0
    %v653 = vsel %vm62, %v650, 0.0
    %v654 = vsel %vm63, %v649, 0.0
    %v655 = vsel %vm64, %v648, 0.0
    %v656 = vadd.f32 %v652, %v546
    %v657 = vadd.f32 %v653, %v548
    %v658 = vadd.f32 %v654, %v629
    %v659 = vadd.f32 %v655, %v631
    %660 = vrot.lane.b32.xlu0 %v552, 127
    %v661 = vpop.permute.xlu0 %660
    %662 = vrot.lane.b32.xlu0 %v554, 127
    %v663 = vpop.permute.xlu0 %662
    %664 = vrot.lane.b32.xlu0 %v635, 127
    %v665 = vpop.permute.xlu0 %664
    %666 = vrot.lane.b32.xlu0 %v637, 127
    %v667 = vpop.permute.xlu0 %666
    %vm668 = vcmp.lt.s32.totalorder %v41, 127
    %v669 = vsel %vm668, %v665, %v667
    %v670 = vsel %vm668, %v663, %v665
    %v671 = vsel %vm668, %v661, %v663
    %v672 = vsel %vm668, %v667, %v661
    %v673 = vsel %vm65, %v671, 0.0
    %v674 = vsel %vm66, %v670, 0.0
    %v675 = vsel %vm67, %v669, 0.0
    %v676 = vsel %vm68, %v672, 0.0
    %v677 = vadd.f32 %v656, %v673
    %v678 = vadd.f32 %v657, %v674
    %v679 = vadd.f32 %v658, %v675
    %v680 = vadd.f32 %v659, %v676
    %682 = vset.pattern.permute.xlu0 0
    %683 = vperm.xlu0 %682, %v35
    %v684 = vpop.permute.xlu0 %683
    %v686 = vadd.f32 %v677, %v684
    %v687 = vadd.f32 %v678, %v684
    %v688 = vadd.f32 %v679, %v684
    %v689 = vadd.f32 %v680, %v684
    %v690 = vmax.f32 %v686, 0.0
    %v691 = vmax.f32 %v687, 0.0
    %v692 = vmax.f32 %v688, 0.0
    %v693 = vmax.f32 %v689, 0.0
    %695 = vset.pattern.permute.xlu0 0
    %696 = vperm.xlu0 %695, %v36
    %v697 = vpop.permute.xlu0 %696
    %700 = vset.pattern.permute.xlu0 0
    %701 = vperm.xlu0 %700, %v37
    %v702 = vpop.permute.xlu0 %701
    %705 = vset.pattern.permute.xlu0 0
    %706 = vperm.xlu0 %705, %v38
    %v707 = vpop.permute.xlu0 %706
    %710 = vset.pattern.permute.xlu0 0
    %711 = vperm.xlu0 %710, %v39
    %v712 = vpop.permute.xlu0 %711
    %v715 = vsel %vm233, %v29, 0
    %v718 = vsel %vm233, %v30, 0
    %v721 = vsel %vm233, %v31, 0
    %v724 = vsel %vm233, %v32, 0
    %726 = vmatprep.subr.mxu0 %v691
    %727 = vmatpush1.msra.mxu0 %v690
    %728 = vmatprep.subr.mxu0 0.0
    %729 = vmatpush1.msra.mxu0 0.0
    %730 = vmatprep.subr.mxu0 0.0
    %731 = vmatpush1.msra.mxu0 0.0
    %732 = vmatprep.subr.mxu0 0.0
    %733 = vmatpush1.msra.mxu0 0.0
    %734 = vmatprep.subr.mxu0 0.0
    %735 = vmatpush1.msra.mxu0 0.0
    %736 = vmatprep.subr.mxu0 0.0
    %737 = vmatpush1.msra.mxu0 0.0
    %738 = vmatprep.subr.mxu0 0.0
    %739 = vmatpush1.msra.mxu0 0.0
    %740 = vmatprep.subr.mxu0 0.0
    %741 = vmatpush1.msra.mxu0 0.0
    %742 = vmatprep.subr.mxu0 0.0
    %743 = vmatpush1.msra.mxu0 0.0
    %744 = vmatprep.subr.mxu0 0.0
    %745 = vmatpush1.msra.mxu0 0.0
    %746 = vmatprep.subr.mxu0 0.0
    %747 = vmatpush1.msra.mxu0 0.0
    %748 = vmatprep.subr.mxu0 0.0
    %749 = vmatpush1.msra.mxu0 0.0
    %750 = vmatprep.subr.mxu0 0.0
    %751 = vmatpush1.msra.mxu0 0.0
    %752 = vmatprep.subr.mxu0 0.0
    %753 = vmatpush1.msra.mxu0 0.0
    %754 = vmatprep.subr.mxu0 0.0
    %755 = vmatpush1.msra.mxu0 0.0
    %756 = vmatprep.subr.mxu0 0.0
    %757 = vmatpush1.msra.mxu0 0.0
    %758 = vmatprep.subr.mxu0 0.0
    %759 = vmatpush1.msra.mxu0 0.0
    %760 = vmatprep.subr.mxu0 0.0
    %761 = vmatpush1.msra.mxu0 0.0
    %762 = vmatprep.subr.mxu0 0.0
    %763 = vmatpush1.msra.mxu0 0.0
    %764 = vmatprep.subr.mxu0 0.0
    %765 = vmatpush1.msra.mxu0 0.0
    %766 = vmatprep.subr.mxu0 0.0
    %767 = vmatpush1.msra.mxu0 0.0
    %768 = vmatprep.subr.mxu0 0.0
    %769 = vmatpush1.msra.mxu0 0.0
    %770 = vmatprep.subr.mxu0 0.0
    %771 = vmatpush1.msra.mxu0 0.0
    %772 = vmatprep.subr.mxu0 0.0
    %773 = vmatpush1.msra.mxu0 0.0
    %774 = vmatprep.subr.mxu0 0.0
    %775 = vmatpush1.msra.mxu0 0.0
    %776 = vmatprep.subr.mxu0 0.0
    %777 = vmatpush1.msra.mxu0 0.0
    %778 = vmatprep.subr.mxu0 0.0
    %779 = vmatpush1.msra.mxu0 0.0
    %780 = vmatprep.subr.mxu0 0.0
    %781 = vmatpush1.msra.mxu0 0.0
    %782 = vmatprep.subr.mxu0 0.0
    %783 = vmatpush1.msra.mxu0 0.0
    %784 = vmatprep.subr.mxu0 0.0
    %785 = vmatpush1.msra.mxu0 0.0
    %786 = vmatprep.subr.mxu0 0.0
    %787 = vmatpush1.msra.mxu0 0.0
    %788 = vmatprep.subr.mxu0 0.0
    %789 = vmatpush1.msra.mxu0 0.0
    %790 = vmatprep.mubr.f32.mxu0 0.0
    %791 = vmatmul.mubr.f32.gmra.mrb[0].mxu0 %v715
    %v792 = vpop.f32.mrb[0].mxu0
    %v793 = vadd.f32 %v697, %v792
    %v794 = vpop.f32.mrb[0].mxu0
    %v795 = vadd.f32 %v697, %v794
    %796 = vmatprep.mubr.f32.mxu0 0.0
    %797 = vmatmul.mubr.f32.gmra.mrb[0].mxu0 %v718
    %v798 = vpop.f32.mrb[0].mxu0
    %v799 = vadd.f32 %v702, %v798
    %v800 = vpop.f32.mrb[0].mxu0
    %v801 = vadd.f32 %v702, %v800
    %802 = vmatprep.mubr.f32.mxu0 0.0
    %803 = vmatmul.mubr.f32.gmra.mrb[0].mxu0 %v721
    %v804 = vpop.f32.mrb[0].mxu0
    %v805 = vadd.f32 %v707, %v804
    %v806 = vpop.f32.mrb[0].mxu0
    %v807 = vadd.f32 %v707, %v806
    %808 = vmatprep.mubr.f32.mxu0 0.0
    %809 = vmatmul.mubr.f32.gmra.mrb[0].mxu0 %v724
    %v810 = vpop.f32.mrb[0].mxu0
    %v811 = vadd.f32 %v712, %v810
    %v812 = vpop.f32.mrb[0].mxu0
    %v813 = vadd.f32 %v712, %v812
    %814 = vdwg.mxu0
    %815 = vmatprep.subr.mxu0 %v693
    %816 = vmatpush1.msra.mxu0 %v692
    %817 = vmatprep.subr.mxu0 0.0
    %818 = vmatpush1.msra.mxu0 0.0
    %819 = vmatprep.subr.mxu0 0.0
    %820 = vmatpush1.msra.mxu0 0.0
    %821 = vmatprep.subr.mxu0 0.0
    %822 = vmatpush1.msra.mxu0 0.0
    %823 = vmatprep.subr.mxu0 0.0
    %824 = vmatpush1.msra.mxu0 0.0
    %825 = vmatprep.subr.mxu0 0.0
    %826 = vmatpush1.msra.mxu0 0.0
    %827 = vmatprep.subr.mxu0 0.0
    %828 = vmatpush1.msra.mxu0 0.0
    %829 = vmatprep.subr.mxu0 0.0
    %830 = vmatpush1.msra.mxu0 0.0
    %831 = vmatprep.subr.mxu0 0.0
    %832 = vmatpush1.msra.mxu0 0.0
    %833 = vmatprep.subr.mxu0 0.0
    %834 = vmatpush1.msra.mxu0 0.0
    %835 = vmatprep.subr.mxu0 0.0
    %836 = vmatpush1.msra.mxu0 0.0
    %837 = vmatprep.subr.mxu0 0.0
    %838 = vmatpush1.msra.mxu0 0.0
    %839 = vmatprep.subr.mxu0 0.0
    %840 = vmatpush1.msra.mxu0 0.0
    %841 = vmatprep.subr.mxu0 0.0
    %842 = vmatpush1.msra.mxu0 0.0
    %843 = vmatprep.subr.mxu0 0.0
    %844 = vmatpush1.msra.mxu0 0.0
    %845 = vmatprep.subr.mxu0 0.0
    %846 = vmatpush1.msra.mxu0 0.0
    %847 = vmatprep.subr.mxu0 0.0
    %848 = vmatpush1.msra.mxu0 0.0
    %849 = vmatprep.subr.mxu0 0.0
    %850 = vmatpush1.msra.mxu0 0.0
    %851 = vmatprep.subr.mxu0 0.0
    %852 = vmatpush1.msra.mxu0 0.0
    %853 = vmatprep.subr.mxu0 0.0
    %854 = vmatpush1.msra.mxu0 0.0
    %855 = vmatprep.subr.mxu0 0.0
    %856 = vmatpush1.msra.mxu0 0.0
    %857 = vmatprep.subr.mxu0 0.0
    %858 = vmatpush1.msra.mxu0 0.0
    %859 = vmatprep.subr.mxu0 0.0
    %860 = vmatpush1.msra.mxu0 0.0
    %861 = vmatprep.subr.mxu0 0.0
    %862 = vmatpush1.msra.mxu0 0.0
    %863 = vmatprep.subr.mxu0 0.0
    %864 = vmatpush1.msra.mxu0 0.0
    %865 = vmatprep.subr.mxu0 0.0
    %866 = vmatpush1.msra.mxu0 0.0
    %867 = vmatprep.subr.mxu0 0.0
    %868 = vmatpush1.msra.mxu0 0.0
    %869 = vmatprep.subr.mxu0 0.0
    %870 = vmatpush1.msra.mxu0 0.0
    %871 = vmatprep.subr.mxu0 0.0
    %872 = vmatpush1.msra.mxu0 0.0
    %873 = vmatprep.subr.mxu0 0.0
    %874 = vmatpush1.msra.mxu0 0.0
    %875 = vmatprep.subr.mxu0 0.0
    %876 = vmatpush1.msra.mxu0 0.0
    %877 = vmatprep.subr.mxu0 0.0
    %878 = vmatpush1.msra.mxu0 0.0
    %879 = vmatprep.mubr.f32.mxu0 0.0
    %880 = vmatmul.mubr.f32.gmra.mrb[0].mxu0 %v715
    %v881 = vpop.f32.mrb[0].mxu0
    %v882 = vadd.f32 %v697, %v881
    %v883 = vpop.f32.mrb[0].mxu0
    %v884 = vadd.f32 %v697, %v883
    %885 = vmatprep.mubr.f32.mxu0 0.0
    %886 = vmatmul.mubr.f32.gmra.mrb[0].mxu0 %v718
    %v887 = vpop.f32.mrb[0].mxu0
    %v888 = vadd.f32 %v702, %v887
    %v889 = vpop.f32.mrb[0].mxu0
    %v890 = vadd.f32 %v702, %v889
    %891 = vmatprep.mubr.f32.mxu0 0.0
    %892 = vmatmul.mubr.f32.gmra.mrb[0].mxu0 %v721
    %v893 = vpop.f32.mrb[0].mxu0
    %v894 = vadd.f32 %v707, %v893
    %v895 = vpop.f32.mrb[0].mxu0
    %v896 = vadd.f32 %v707, %v895
    %897 = vmatprep.mubr.f32.mxu0 0.0
    %898 = vmatmul.mubr.f32.gmra.mrb[0].mxu0 %v724
    %v899 = vpop.f32.mrb[0].mxu0
    %v900 = vadd.f32 %v712, %v899
    %v901 = vpop.f32.mrb[0].mxu0
    %v902 = vadd.f32 %v712, %v901
    %903 = vdwg.mxu0
    %904 = vst [vmem:[#allocation2] sm:$0xff] %v793
    %905 = vst [vmem:[#allocation2 + $0x8] sm:$0xff] %v795
    %906 = vst [vmem:[#allocation2 + $0x10] sm:$0xff] %v799
    %907 = vst [vmem:[#allocation2 + $0x18] sm:$0xff] %v801
    %908 = vst [vmem:[#allocation2 + $0x20] sm:$0xff] %v805
    %909 = vst [vmem:[#allocation2 + $0x28] sm:$0xff] %v807
    %910 = vst [vmem:[#allocation2 + $0x30] sm:$0xff] %v811
    %911 = vst [vmem:[#allocation2 + $0x38] sm:$0xff] %v813
    %s912 = scalar_lea.vmem [#allocation2], 64
    %913 = vst [vmem:[%s912] sm:$0xff] %v882
    %914 = vst [vmem:[%s912 + $0x8] sm:$0xff] %v884
    %915 = vst [vmem:[%s912 + $0x10] sm:$0xff] %v888
    %916 = vst [vmem:[%s912 + $0x18] sm:$0xff] %v890
    %917 = vst [vmem:[%s912 + $0x20] sm:$0xff] %v894
    %918 = vst [vmem:[%s912 + $0x28] sm:$0xff] %v896
    %919 = vst [vmem:[%s912 + $0x30] sm:$0xff] %v900
    %920 = vst [vmem:[%s912 + $0x38] sm:$0xff] %v902
    // Predicated region
    $region14: #{tpu_custom_call.1} parent=1 // pred_check
      _
    $region15: #{tpu_custom_call.1} parent=1 // pred_check_branch
      %922 = sbr.rel (0) target = $region17
    $region16: #{tpu_custom_call.1} parent=1 // pred_region
      %s924 = ssub.s32 2048, 2048
      %925 = vsyncadd [#allocation3], %s924
      %s926 = sshll.u32 [#allocation2], 4
      %s927 = int_to_ptr.vmem [resolvable:$true] %s926
      %932 = dma.vmem_to_hbm [thread:$0]  %s927, 2048, %s3, [#allocation3], 256, 256, 16
    $region17: #{tpu_custom_call.1} parent=1 // pred_fallthru
      _
    // Predicated region
    $region18: #{tpu_custom_call.1} parent=1 // pred_check
      _
    $region19: #{tpu_custom_call.1} parent=1 // pred_check_branch
      %934 = sbr.rel (0) target = $region21
    $region20: #{tpu_custom_call.1} parent=1 // pred_region
      %935 = dma.done [#allocation3], 2048
    $region21: #{tpu_custom_call.1} parent=1 // pred_fallthru
      _
    %936 = vsyncpa [#allocation3], 1

</llo_original>
